<compile_context>
chip_gen: v7x
topology: tpu7x:2x2x1
jax: 0.10.0
libtpu: 0.0.40
codegen_flags: <defaults>
</compile_context>

<pallas_src>
import jax
import jax.numpy as jnp
from jax.experimental import pallas as pl
from jax.experimental.pallas import tpu as pltpu


def _binarize_kernel(x_ref, o_ref):
    # One VPU compare + cast; kernel cost is entirely the HBM <-> VMEM DMA.
    o_ref[...] = (x_ref[...] > 0.5).astype(o_ref.dtype)


def _choose_layout(total: int, itemsize: int, target_block_bytes: int):
    """Pick (lane, row_tile, grid_rows) for a lane-dense (rows, lane) slab."""
    # Sublane alignment requirement grows for sub-32-bit dtypes.
    sublane = max(8, 32 // max(itemsize, 1))

    # Widest lane width that divides the flat size, preferring sublane-aligned
    # row counts; fall back to 128 + padding.
    lane = None
    for cand in (2048, 1024, 512, 256, 128):
        if total % cand == 0 and (total // cand) % sublane == 0:
            lane = cand
            break
    if lane is None:
        for cand in (2048, 1024, 512, 256, 128):
            if total % cand == 0:
                lane = cand
                break
    if lane is None:
        lane = 128
    rows = pl.cdiv(total, lane)

    max_block_rows = max(sublane, target_block_bytes // (lane * itemsize))
    if rows <= max_block_rows:
        # Whole slab in one block; block dim == full array dim is always legal.
        return lane, rows, rows

    # Prefer a row tile that divides `rows` exactly (no padding pass needed).
    start = (max_block_rows // sublane) * sublane
    row_tile = None
    for cand in range(start, sublane - 1, -sublane):
        if rows % cand == 0:
            row_tile = cand
            break
    if row_tile is None:
        row_tile = start
    grid_rows = pl.cdiv(rows, row_tile) * row_tile
    return lane, row_tile, grid_rows


def binarize(x: jax.Array, *, target_block_bytes: int = 2 * 1024 * 1024) -> jax.Array:
    """Elementwise binarization: 1 where x > 0.5 else 0. Matches torch semantics."""
    orig_shape = x.shape
    dtype = x.dtype
    total = x.size
    itemsize = jnp.dtype(dtype).itemsize

    lane, row_tile, grid_rows = _choose_layout(total, itemsize, target_block_bytes)
    padded_total = grid_rows * lane
    pad = padded_total - total

    x_flat = x.reshape(-1)
    if pad:
        # Zero padding is safe (0 > 0.5 is False); sliced off again below.
        # The common NCHW case takes the no-pad fast path.
        x_flat = jnp.pad(x_flat, (0, pad))
    x2d = x_flat.reshape(grid_rows, lane)

    grid = (grid_rows // row_tile,)
    out2d = pl.pallas_call(
        _binarize_kernel,
        out_shape=jax.ShapeDtypeStruct((grid_rows, lane), dtype),
        grid_spec=pltpu.PrefetchScalarGridSpec(
            num_scalar_prefetch=0,
            grid=grid,
            in_specs=[pl.BlockSpec((row_tile, lane), lambda i: (i, 0))],
            out_specs=pl.BlockSpec((row_tile, lane), lambda i: (i, 0)),
        ),
        compiler_params=pltpu.CompilerParams(
            dimension_semantics=("parallel",),
        ),
    )(x2d)

    out_flat = out2d.reshape(-1)
    if pad:
        out_flat = out_flat[:total]
    return out_flat.reshape(orig_shape)


if __name__ == "__main__":
    key = jax.random.PRNGKey(0)

    def _check(shape):
        k = jax.random.fold_in(key, hash(shape) & 0x7FFFFFFF)
        xin = jax.random.uniform(k, shape, dtype=jnp.float32)
        out = binarize(xin)
        jax.block_until_ready(out)
        ref = jnp.where(xin > 0.5, jnp.ones_like(xin), jnp.zeros_like(xin))
        assert out.shape == xin.shape
        assert out.dtype == xin.dtype
        assert jnp.array_equal(out, ref)

    # Primary small NCHW input matching the module's expected use.
    _check((2, 4, 16, 16))
    # Ragged size exercising the single-pad fallback path.
    _check((3, 5, 17, 13))
    # Larger size exercising the multi-block (grid > 1) tiled path.
    _check((2, 8, 256, 256))

    print("KERNEL_OK")
</pallas_src>

<mosaic_0001>
module attributes {stable_mosaic.version = 11 : i64} {
  func.func @_binarize_kernel(%arg0: i32, %arg1: memref<8x256xf32, #tpu.memory_space<vmem>>, %arg2: memref<8x256xf32, #tpu.memory_space<vmem>>) attributes {dimension_semantics = [#tpu.dimension_semantics<parallel>], iteration_bounds = array<i64: 1>, scalar_prefetch = 0 : i64, scratch_operands = 0 : i64, tpu.core_type = #tpu.core_type<tc>, window_params = [{transform_indices = @transform_0, window_bounds = array<i64: 8, 256>}, {transform_indices = @transform_1, window_bounds = array<i64: 8, 256>}]} {
    %c0 = arith.constant 0 : index
    %c0_0 = arith.constant 0 : index
    %0 = vector.load %arg1[%c0, %c0_0] : memref<8x256xf32, #tpu.memory_space<vmem>>, vector<8x256xf32>
    %cst = arith.constant 5.000000e-01 : f32
    %1 = vector.broadcast %cst : f32 to vector<8x256xf32>
    %2 = arith.cmpf ogt, %0, %1 : vector<8x256xf32>
    %3 = arith.extui %2 : vector<8x256xi1> to vector<8x256xi32>
    %4 = arith.sitofp %3 : vector<8x256xi32> to vector<8x256xf32>
    %c0_1 = arith.constant 0 : index
    %c0_2 = arith.constant 0 : index
    %5 = vector.load %arg2[%c0_1, %c0_2] : memref<8x256xf32, #tpu.memory_space<vmem>>, vector<8x256xf32>
    tpu.vector_store %arg2[%c0_1, %c0_2], %4 {strides = array<i32>} : memref<8x256xf32, #tpu.memory_space<vmem>>, vector<8x256xf32>,
    return
  }
  func.func @transform_0(%arg0: i32) -> (i32, i32) {
    %c0_i32 = arith.constant 0 : i32
    %c0_i32_0 = arith.constant 0 : i32
    return %arg0, %c0_i32 : i32, i32
  }
  func.func @transform_1(%arg0: i32) -> (i32, i32) {
    %c0_i32 = arith.constant 0 : i32
    %c0_i32_0 = arith.constant 0 : i32
    return %arg0, %c0_i32 : i32, i32
  }
}

</mosaic_0001>

<llo_original>
// kernel: tpu_custom_call.1
$region0: #{tpu_custom_call.1}
  #allocation0 [shape = 'u32[]', space=smem, size = 0x4, offset = 0x4, fixed_abs, tag = 'smem constant byte address 0x4 - core index']
  #allocation1 [shape = 'u32[144,128]{1,0:T(1,128)}', space=vmem, size = 0x12000, scoped, tag = 'internal scratch']
  %s0 = inlined_call_operand.hbm [shape: f32[8,256], index: 0, kind: input, shape index: {}]
  %s1 = inlined_call_operand.hbm [shape: f32[8,256], index: 1, kind: output, shape index: {}]
  %s2 = sld [smem:[#allocation0]]
  $region18: #{tpu_custom_call.1} parent=0
    _
  %s4 = ssub.s32 1, %s2
  %s5 = scalar_select 0, %s4, %s2
  $region1: #{tpu_custom_call.1} parent=0
    #allocation2 [shape = 'u8[8192]{0}', space=vmem, size = 0x2000, scoped, tag = 'input window, operand 0, single buffered']
    #allocation3 [shape = 's32[1]{0}', space=sflag, size = 0x4, scoped, tag = 'scoped memory for tpu_custom_call.1']
    #allocation4 [shape = 's32[1]{0}', space=sflag, size = 0x4, scoped, tag = 'scoped memory for tpu_custom_call.1']
    #allocation5 [shape = 'u8[8192]{0}', space=vmem, size = 0x2000, scoped, tag = 'output window, operand 0, single buffered']
    %6 = vsyncpa [#allocation3], 0
    %7 = vsyncpa [#allocation4], 0
    // Predicated region
    $region2: #{tpu_custom_call.1} parent=1 // pred_check
      _
    $region3: #{tpu_custom_call.1} parent=1 // pred_check_branch
      %9 = sbr.rel (0) target = $region5
    $region4: #{tpu_custom_call.1} parent=1 // pred_region
      %s11 = ssub.s32 256, 256
      %12 = vsyncadd [#allocation3], %s11
      %s14 = sshll.u32 [#allocation2], 4
      %s15 = int_to_ptr.vmem [resolvable:$true] %s14
      %17 = dma.hbm_to_vmem [thread:$0]  %s0, 256, %s15, [#allocation3]
    $region5: #{tpu_custom_call.1} parent=1 // pred_fallthru
      _
    // Predicated region
    $region6: #{tpu_custom_call.1} parent=1 // pred_check
      _
    $region7: #{tpu_custom_call.1} parent=1 // pred_check_branch
      %19 = sbr.rel (0) target = $region9
    $region8: #{tpu_custom_call.1} parent=1 // pred_region
      %20 = dma.done [#allocation3], 256
    $region9: #{tpu_custom_call.1} parent=1 // pred_fallthru
      _
    %v21 = vld [vmem:[#allocation2] sm:$0xff]
    %v22 = vld [vmem:[#allocation2 + $0x8] sm:$0xff]
    %vm23 = vcmp.gt.f32.partialorder %v21, 0.5
    %vm24 = vcmp.gt.f32.partialorder %v22, 0.5
    %v25 = vsel %vm23, 1, 0
    %v26 = vsel %vm24, 1, 0
    %v27 = vcvt.s32.f32 %v25
    %v28 = vcvt.s32.f32 %v26
    %29 = vst [vmem:[#allocation5] sm:$0xff] %v27
    %30 = vst [vmem:[#allocation5 + $0x8] sm:$0xff] %v28
    // Predicated region
    $region10: #{tpu_custom_call.1} parent=1 // pred_check
      _
    $region11: #{tpu_custom_call.1} parent=1 // pred_check_branch
      %32 = sbr.rel (0) target = $region13
    $region12: #{tpu_custom_call.1} parent=1 // pred_region
      %s34 = ssub.s32 256, 256
      %35 = vsyncadd [#allocation4], %s34
      %s37 = sshll.u32 [#allocation5], 4
      %s38 = int_to_ptr.vmem [resolvable:$true] %s37
      %40 = dma.vmem_to_hbm [thread:$0]  %s38, 256, %s1, [#allocation4]
    $region13: #{tpu_custom_call.1} parent=1 // pred_fallthru
      _
    // Predicated region
    $region14: #{tpu_custom_call.1} parent=1 // pred_check
      _
    $region15: #{tpu_custom_call.1} parent=1 // pred_check_branch
      %42 = sbr.rel (0) target = $region17
    $region16: #{tpu_custom_call.1} parent=1 // pred_region
      %43 = dma.done [#allocation4], 256
    $region17: #{tpu_custom_call.1} parent=1 // pred_fallthru
      _
    %44 = vsyncpa [#allocation3], 1
    %45 = vsyncpa [#allocation4], 1

</llo_original>
